<compile_context>
chip_gen: v5e
topology: v5e:2x2
jax: 0.10.0
libtpu: 0.0.40
codegen_flags: <defaults>
</compile_context>

<pallas_src>
import jax
import jax.numpy as jnp
from jax import lax
from jax.experimental import pallas as pl
from jax.experimental.pallas import tpu as pltpu

EPS = 1e-5


# ---------------------------------------------------------------------------
# Block sizing helpers
# ---------------------------------------------------------------------------
def _round_up(x, m):
    return ((x + m - 1) // m) * m


def _vmem_budget_bytes():
    """Generation-aware VMEM budget for one pallas_call (with headroom)."""
    try:
        cap = int(pltpu.get_tpu_info().vmem_capacity_bytes)
    except Exception:
        cap = 64 << 20                      # conservative: v7x per-TC VMEM
    return min(cap // 2, 32 << 20)


def _pick_block_batch(B, L, C, budget):
    """Pick bt (batch rows per grid step).

    Sized against the PADDED fp32 in-kernel working set (not the input
    itemsize): one (bt, L, C) block occupies bt * pad8(L) * pad128(C) * 4
    bytes once upcast to f32.  ~8 block-sized slabs are live at peak
    (2x double-buffered input, 2x double-buffered output, plus f32
    upcast / centered-value temporaries), so each block gets budget/8.

    Grid preference (v7x megacore): even grid >= 4 (>= 2 steps per
    TensorCore, balanced), else grid >= 2, else anything that fits."""
    per_row = _round_up(L, 8) * _round_up(C, 128) * 4
    limit = budget // 8
    fits = [d for d in range(1, B + 1) if B % d == 0 and d * per_row <= limit]
    if not fits:
        # Guard: a single batch row must fit; otherwise the L axis would need
        # tiling (not required at RevIN's typical sequence lengths).
        assert per_row <= budget // 4, (
            f"single (1,{L},{C}) fp32 block needs {per_row} bytes of VMEM, "
            f"exceeding the budget ({budget} bytes); tile the L axis")
        fits = [1]

    def _grid_ok_v7x(d):
        g = B // d
        return g >= 4 and g % 2 == 0

    def _grid_ok(d):
        return B // d >= 2

    for pred in (_grid_ok_v7x, _grid_ok, lambda d: True):
        cand = [d for d in fits if pred(d)]
        if cand:
            return max(cand)
    return 1  # unreachable


# ---------------------------------------------------------------------------
# Kernels (native [B, L, C] layout; reduction over the sublane L axis)
# ---------------------------------------------------------------------------
def _revin_norm_kernel(x_ref, w_ref, b_ref, y_ref, stats_ref):
    x = x_ref[...].astype(jnp.float32)                       # (bt, L, C)
    inv_l = 1.0 / x.shape[1]

    # Two-pass statistics (numerically safe): mean, then centered moments.
    mean = jnp.sum(x, axis=1, keepdims=True) * inv_l         # (bt, 1, C)
    d = x - mean                                             # (bt, L, C)
    var = jnp.sum(d * d, axis=1, keepdims=True) * inv_l      # population var
    stdev = jnp.sqrt(var + EPS)                              # (bt, 1, C)

    w = w_ref[...].astype(jnp.float32)                       # (1, 1, C)
    b = b_ref[...].astype(jnp.float32)                       # (1, 1, C)

    # y = (x - mean)/stdev * w + b  ==  d * scale + b   (one fused pass)
    scale = w * pl.reciprocal(stdev, approx=False)           # (bt, 1, C)
    y_ref[...] = (d * scale + b).astype(y_ref.dtype)

    # Packed stats: row 0 = mean, row 1 = stdev, written with a single store.
    bt, _, c = x.shape
    row = lax.broadcasted_iota(jnp.int32, (bt, 2, c), 1)
    stats_ref[...] = jnp.where(row == 0, mean, stdev).astype(stats_ref.dtype)


def _revin_denorm_kernel(x_ref, stats_ref, w_ref, b_ref, y_ref):
    x = x_ref[...].astype(jnp.float32)                       # (bt, L, C)
    stats = stats_ref[...].astype(jnp.float32)               # (bt, 2, C)
    mean = stats[:, 0:1, :]                                  # (bt, 1, C)
    stdev = stats[:, 1:2, :]                                 # (bt, 1, C)
    w = w_ref[...].astype(jnp.float32)                       # (1, 1, C)
    b = b_ref[...].astype(jnp.float32)                       # (1, 1, C)

    # y = (x - b)/(w + eps^2) * stdev + mean  ==  x * scale + shift
    inv_w = pl.reciprocal(w + EPS * EPS, approx=False)       # (1, 1, C)
    scale = inv_w * stdev                                    # (bt, 1, C)
    shift = mean - b * scale                                 # (bt, 1, C)
    y_ref[...] = (x * scale + shift).astype(y_ref.dtype)


# ---------------------------------------------------------------------------
# Wrappers (public interface matches the PyTorch module: x [B, L, C],
# mean/stdev [B, 1, C], affine params [C])
# ---------------------------------------------------------------------------
def revin_norm(x, affine_weight, affine_bias):
    """x: [B, L, C]; affine_weight/bias: [C].  Returns (y, mean, stdev)."""
    B, L, C = x.shape
    w = affine_weight.reshape(1, 1, C).astype(jnp.float32)
    b = affine_bias.reshape(1, 1, C).astype(jnp.float32)

    budget = _vmem_budget_bytes()
    bt = _pick_block_batch(B, L, C, budget)
    grid = (B // bt,)

    x_spec = pl.BlockSpec((bt, L, C), lambda i: (i, 0, 0))
    p_spec = pl.BlockSpec((1, 1, C), lambda i: (0, 0, 0))
    stats_spec = pl.BlockSpec((bt, 2, C), lambda i: (i, 0, 0))

    cost = pl.CostEstimate(
        flops=6 * B * L * C,
        transcendentals=2 * B * C,
        bytes_accessed=2 * B * L * C * x.dtype.itemsize + 2 * B * C * 4 + 2 * C * 4,
    )

    y, stats = pl.pallas_call(
        _revin_norm_kernel,
        out_shape=(
            jax.ShapeDtypeStruct((B, L, C), x.dtype),
            jax.ShapeDtypeStruct((B, 2, C), jnp.float32),
        ),
        grid_spec=pltpu.PrefetchScalarGridSpec(
            num_scalar_prefetch=0,
            grid=grid,
            in_specs=[x_spec, p_spec, p_spec],
            out_specs=[x_spec, stats_spec],
        ),
        compiler_params=pltpu.CompilerParams(
            dimension_semantics=("parallel",),
            vmem_limit_bytes=budget),
        cost_estimate=cost,
    )(x, w, b)

    mean = stats[:, 0:1, :]                                  # (B, 1, C)
    stdev = stats[:, 1:2, :]                                 # (B, 1, C)
    return y, mean, stdev


def revin_denorm(x, mean, stdev, affine_weight, affine_bias):
    """x: [B, L, C]; mean/stdev: [B, 1, C]; weight/bias: [C]."""
    B, L, C = x.shape
    # Pack stats into one (B, 2, C) stream (tiny; keeps a single small
    # block-resident input per grid step, no per-tensor transposes anywhere).
    stats = jnp.concatenate(
        [mean.astype(jnp.float32), stdev.astype(jnp.float32)], axis=1)
    w = affine_weight.reshape(1, 1, C).astype(jnp.float32)
    b = affine_bias.reshape(1, 1, C).astype(jnp.float32)

    budget = _vmem_budget_bytes()
    bt = _pick_block_batch(B, L, C, budget)
    grid = (B // bt,)

    x_spec = pl.BlockSpec((bt, L, C), lambda i: (i, 0, 0))
    stats_spec = pl.BlockSpec((bt, 2, C), lambda i: (i, 0, 0))
    p_spec = pl.BlockSpec((1, 1, C), lambda i: (0, 0, 0))

    cost = pl.CostEstimate(
        flops=2 * B * L * C,
        transcendentals=B * C,
        bytes_accessed=2 * B * L * C * x.dtype.itemsize + 2 * B * C * 4 + 2 * C * 4,
    )

    y = pl.pallas_call(
        _revin_denorm_kernel,
        out_shape=jax.ShapeDtypeStruct((B, L, C), x.dtype),
        grid_spec=pltpu.PrefetchScalarGridSpec(
            num_scalar_prefetch=0,
            grid=grid,
            in_specs=[x_spec, stats_spec, p_spec, p_spec],
            out_specs=x_spec,
        ),
        compiler_params=pltpu.CompilerParams(
            dimension_semantics=("parallel",),
            vmem_limit_bytes=budget),
        cost_estimate=cost,
    )(x, stats, w, b)

    return y


# ---------------------------------------------------------------------------
# Pure-JAX reference (mirrors the PyTorch module exactly)
# ---------------------------------------------------------------------------
def _ref_norm(x, w, b):
    mean = jnp.mean(x, axis=1, keepdims=True)
    var = jnp.var(x, axis=1, keepdims=True)          # unbiased=False
    stdev = jnp.sqrt(var + EPS)
    y = (x - mean) / stdev
    y = y * w.reshape(1, 1, -1) + b.reshape(1, 1, -1)
    return y, mean, stdev


def _ref_denorm(x, mean, stdev, w, b):
    y = x - b.reshape(1, 1, -1)
    y = y / (w.reshape(1, 1, -1) + EPS * EPS)
    y = y * stdev + mean
    return y


def _check_one(key, B, L, C):
    kx, kw, kb = jax.random.split(key, 3)
    x = jax.random.normal(kx, (B, L, C), dtype=jnp.float32) * 2.0 + 0.5
    # Non-trivial affine params exercise the scale/shift folding
    # (module init is ones/zeros, but params are learnable).
    affine_weight = 1.0 + 0.1 * jnp.arange(C, dtype=jnp.float32)
    affine_bias = 0.05 * jnp.arange(C, dtype=jnp.float32)

    # --- mode == 'norm' ---
    y, mean, stdev = revin_norm(x, affine_weight, affine_bias)
    y = jax.block_until_ready(y)
    mean = jax.block_until_ready(mean)
    stdev = jax.block_until_ready(stdev)

    y_ref, mean_ref, stdev_ref = _ref_norm(x, affine_weight, affine_bias)
    assert jnp.allclose(y, y_ref, atol=1e-5, rtol=1e-5)
    assert jnp.allclose(mean, mean_ref, atol=1e-5, rtol=1e-5)
    assert jnp.allclose(stdev, stdev_ref, atol=1e-5, rtol=1e-5)

    # --- mode == 'denorm' ---  (round-trip should recover x)
    x_rec = revin_denorm(y, mean, stdev, affine_weight, affine_bias)
    x_rec = jax.block_until_ready(x_rec)

    x_rec_ref = _ref_denorm(y_ref, mean_ref, stdev_ref, affine_weight, affine_bias)
    assert jnp.allclose(x_rec, x_rec_ref, atol=1e-5, rtol=1e-5)
    assert jnp.allclose(x_rec, x, atol=1e-4, rtol=1e-4)


# ---------------------------------------------------------------------------
if __name__ == "__main__":
    key = jax.random.PRNGKey(0)
    k1, k2 = jax.random.split(key)

    # Small canonical shape: batch=2, seq=8, num_features=4.
    _check_one(k1, B=2, L=8, C=4)
    # Slightly larger shape to exercise batch folding (bt>1) and an even
    # grid >= 4 (megacore-friendly split).
    _check_one(k2, B=8, L=32, C=6)

    print("KERNEL_OK")
</pallas_src>

<mosaic_0001>
module attributes {stable_mosaic.version = 11 : i64} {
  func.func @_revin_norm_kernel(%arg0: i32, %arg1: memref<1x8x4xf32, #tpu.memory_space<vmem>>, %arg2: memref<1x1x4xf32, #tpu.memory_space<vmem>>, %arg3: memref<1x1x4xf32, #tpu.memory_space<vmem>>, %arg4: memref<1x8x4xf32, #tpu.memory_space<vmem>>, %arg5: memref<1x2x4xf32, #tpu.memory_space<vmem>>) attributes {dimension_semantics = [#tpu.dimension_semantics<parallel>], iteration_bounds = array<i64: 2>, scalar_prefetch = 0 : i64, scratch_operands = 0 : i64, tpu.core_type = #tpu.core_type<tc>, window_params = [{transform_indices = @transform_0, window_bounds = array<i64: 1, 8, 4>}, {pipeline_mode = #tpu.pipeline_mode<synchronous>, transform_indices = @transform_1, window_bounds = array<i64: 1, 1, 4>}, {pipeline_mode = #tpu.pipeline_mode<synchronous>, transform_indices = @transform_2, window_bounds = array<i64: 1, 1, 4>}, {transform_indices = @transform_3, window_bounds = array<i64: 1, 8, 4>}, {transform_indices = @transform_4, window_bounds = array<i64: 1, 2, 4>}]} {
    %c0 = arith.constant 0 : index
    %c0_0 = arith.constant 0 : index
    %c0_1 = arith.constant 0 : index
    %0 = vector.load %arg1[%c0, %c0_0, %c0_1] : memref<1x8x4xf32, #tpu.memory_space<vmem>>, vector<1x8x4xf32>
    %cst = arith.constant dense<0.000000e+00> : vector<1x4xf32>
    %1 = vector.multi_reduction <add>, %0, %cst [1] : vector<1x8x4xf32> to vector<1x4xf32>
    %2 = vector.shape_cast %1 : vector<1x4xf32> to vector<1x1x4xf32>
    %cst_2 = arith.constant 1.250000e-01 : f32
    %3 = vector.broadcast %cst_2 : f32 to vector<1x1x4xf32>
    %4 = arith.mulf %2, %3 : vector<1x1x4xf32>
    %5 = vector.broadcast %4 : vector<1x1x4xf32> to vector<1x8x4xf32>
    %6 = arith.subf %0, %5 : vector<1x8x4xf32>
    %7 = arith.mulf %6, %6 : vector<1x8x4xf32>
    %cst_3 = arith.constant dense<0.000000e+00> : vector<1x4xf32>
    %8 = vector.multi_reduction <add>, %7, %cst_3 [1] : vector<1x8x4xf32> to vector<1x4xf32>
    %9 = vector.shape_cast %8 : vector<1x4xf32> to vector<1x1x4xf32>
    %cst_4 = arith.constant 1.250000e-01 : f32
    %10 = vector.broadcast %cst_4 : f32 to vector<1x1x4xf32>
    %11 = arith.mulf %9, %10 : vector<1x1x4xf32>
    %cst_5 = arith.constant 9.99999974E-6 : f32
    %12 = vector.broadcast %cst_5 : f32 to vector<1x1x4xf32>
    %13 = arith.addf %11, %12 : vector<1x1x4xf32>
    %14 = math.sqrt %13 : vector<1x1x4xf32>
    %c0_6 = arith.constant 0 : index
    %c0_7 = arith.constant 0 : index
    %c0_8 = arith.constant 0 : index
    %15 = vector.load %arg2[%c0_6, %c0_7, %c0_8] : memref<1x1x4xf32, #tpu.memory_space<vmem>>, vector<1x1x4xf32>
    %c0_9 = arith.constant 0 : index
    %c0_10 = arith.constant 0 : index
    %c0_11 = arith.constant 0 : index
    %16 = vector.load %arg3[%c0_9, %c0_10, %c0_11] : memref<1x1x4xf32, #tpu.memory_space<vmem>>, vector<1x1x4xf32>
    %17 = tpu.reciprocal %14 : vector<1x1x4xf32> -> vector<1x1x4xf32>
    %18 = arith.mulf %15, %17 : vector<1x1x4xf32>
    %19 = vector.broadcast %18 : vector<1x1x4xf32> to vector<1x8x4xf32>
    %20 = arith.mulf %6, %19 : vector<1x8x4xf32>
    %21 = vector.broadcast %16 : vector<1x1x4xf32> to vector<1x8x4xf32>
    %22 = arith.addf %20, %21 : vector<1x8x4xf32>
    %c0_12 = arith.constant 0 : index
    %c0_13 = arith.constant 0 : index
    %c0_14 = arith.constant 0 : index
    %23 = vector.load %arg4[%c0_12, %c0_13, %c0_14] : memref<1x8x4xf32, #tpu.memory_space<vmem>>, vector<1x8x4xf32>
    tpu.vector_store %arg4[%c0_12, %c0_13, %c0_14], %22 {strides = array<i32>} : memref<1x8x4xf32, #tpu.memory_space<vmem>>, vector<1x8x4xf32>,
    %24 = tpu.iota {dimensions = array<i32: 1>} : vector<1x2x4xi32>
    %c0_i32 = arith.constant 0 : i32
    %25 = vector.broadcast %c0_i32 : i32 to vector<1x2x4xi32>
    %26 = arith.cmpi eq, %24, %25 : vector<1x2x4xi32>
    %27 = vector.shape_cast %4 : vector<1x1x4xf32> to vector<1x1x4xf32>
    %28 = vector.broadcast %27 : vector<1x1x4xf32> to vector<1x2x4xf32>
    %29 = vector.shape_cast %14 : vector<1x1x4xf32> to vector<1x1x4xf32>
    %30 = vector.broadcast %29 : vector<1x1x4xf32> to vector<1x2x4xf32>
    %31 = arith.select %26, %28, %30 : vector<1x2x4xi1>, vector<1x2x4xf32>
    %c0_15 = arith.constant 0 : index
    %c0_16 = arith.constant 0 : index
    %c0_17 = arith.constant 0 : index
    %32 = vector.load %arg5[%c0_15, %c0_16, %c0_17] : memref<1x2x4xf32, #tpu.memory_space<vmem>>, vector<1x2x4xf32>
    tpu.vector_store %arg5[%c0_15, %c0_16, %c0_17], %31 {strides = array<i32>} : memref<1x2x4xf32, #tpu.memory_space<vmem>>, vector<1x2x4xf32>,
    return
  }
  func.func @transform_0(%arg0: i32) -> (i32, i32, i32) {
    %c0_i32 = arith.constant 0 : i32
    %c0_i32_0 = arith.constant 0 : i32
    %c0_i32_1 = arith.constant 0 : i32
    return %arg0, %c0_i32, %c0_i32_0 : i32, i32, i32
  }
  func.func @transform_1(%arg0: i32) -> (i32, i32, i32) {
    %c0_i32 = arith.constant 0 : i32
    %c0_i32_0 = arith.constant 0 : i32
    %c0_i32_1 = arith.constant 0 : i32
    %c0_i32_2 = arith.constant 0 : i32
    return %c0_i32, %c0_i32_0, %c0_i32_1 : i32, i32, i32
  }
  func.func @transform_2(%arg0: i32) -> (i32, i32, i32) {
    %c0_i32 = arith.constant 0 : i32
    %c0_i32_0 = arith.constant 0 : i32
    %c0_i32_1 = arith.constant 0 : i32
    %c0_i32_2 = arith.constant 0 : i32
    return %c0_i32, %c0_i32_0, %c0_i32_1 : i32, i32, i32
  }
  func.func @transform_3(%arg0: i32) -> (i32, i32, i32) {
    %c0_i32 = arith.constant 0 : i32
    %c0_i32_0 = arith.constant 0 : i32
    %c0_i32_1 = arith.constant 0 : i32
    return %arg0, %c0_i32, %c0_i32_0 : i32, i32, i32
  }
  func.func @transform_4(%arg0: i32) -> (i32, i32, i32) {
    %c0_i32 = arith.constant 0 : i32
    %c0_i32_0 = arith.constant 0 : i32
    %c0_i32_1 = arith.constant 0 : i32
    return %arg0, %c0_i32, %c0_i32_0 : i32, i32, i32
  }
}

</mosaic_0001>

<llo_original>
// kernel: tpu_custom_call.1
$region0: #{tpu_custom_call.1}
  #allocation0 [shape = 'u32[]', space=smem, size = 0x4, offset = 0x4, fixed_abs, tag = 'smem constant byte address 0x4 - core index']
  #allocation1 [shape = 'u32[72,128]{1,0:T(1,128)}', space=vmem, size = 0x9000, scoped, tag = 'internal scratch']
  %s0 = inlined_call_operand.vmem [shape: f32[2,8,4], index: 0, kind: input, shape index: {}]
  %s1 = inlined_call_operand.vmem [shape: f32[1,1,4], index: 1, kind: input, shape index: {}]
  %s2 = inlined_call_operand.vmem [shape: f32[1,1,4], index: 2, kind: input, shape index: {}]
  %s3 = inlined_call_operand.vmem [shape: f32[2,8,4], index: 3, kind: output, shape index: {0}]
  %s4 = inlined_call_operand.hbm [shape: f32[2,2,4], index: 4, kind: output, shape index: {1}]
  %5 = xla_tuple %s3, %s4
  %s6 = sld [smem:[#allocation0]]
  $region53: #{tpu_custom_call.1} parent=0
    _
  %s8 = ssub.s32 1, %s6
  %s9 = scalar_select 0, %s8, %s6
  $region1: #{tpu_custom_call.1} parent=0
    #allocation2 [shape = 'u8[2048]{0}', space=vmem, size = 0x800, scoped, tag = 'output window, operand 1']
    #allocation3 [shape = 's32[2]{0}', space=sflag, size = 0x8, scoped, tag = 'scoped memory for tpu_custom_call.1']
    %10 = vsyncpa [#allocation3], 0
    %s11 = scalar_lea.sflag [#allocation3], 1
    %12 = vsyncpa %s11, 0
    loop: start=0, step=1, limit=4
    $region2: #{tpu_custom_call.1} parent=1 // loop_pre_header
      _
    $region3: #{tpu_custom_call.1} parent=1 // loop_header
      %s14 = sphi 0, %s18
      %p15 = scmp.ge.s32.totalorder %s14, 4
      %s24 = sphi 0, %s26
      %s27 = sphi 0, %s24
      %s28 = sphi 0, %s27
      %s44 = sphi 0, %s28
      %s48 = sphi 0, %s48
      %s50 = sphi 0, %s48
      %s51 = sphi 0, %s50
      %s65 = sphi 0, %s51
      %s69 = sphi 0, %s69
      %s71 = sphi 0, %s69
      %s72 = sphi 0, %s71
      %s86 = sphi 0, %s72
      %s92 = sphi 0, %s94
      %s95 = sphi 0, %s92
      %s96 = sphi 0, %s95
      %s112 = sphi 0, %s96
      %s118 = sphi 0, %s120
      %s121 = sphi 0, %s118
      %s122 = sphi 0, %s121
      %s138 = sphi 0, %s122
    $region4: #{tpu_custom_call.1} parent=1 // loop_header_branch
      %17 = sbr.rel (%p15) target = $region8
    $region5: #{tpu_custom_call.1} parent=1 // loop_body
      %s19 = ssub.s32 %s14, 1
      %s20 = ssub.s32 %s14, 2
      %s21 = sadd.s32 %s14, 1
      %s22 = ssub.s32 %s14, %s21
      %p23 = scmp.eq.s32.totalorder %s22, 0
      %s25 = sadd.s32 %s24, 1
      %s26 = scalar_select %p23, %s24, %s25
      %p29 = pneg %p23
      %p30 = scmp.eq.s32.totalorder %s14, 1
      %p31 = por %p29, %p30
      %p32 = scmp.ne.s32.totalorder %s24, %s27
      %p33 = scmp.eq.s32.totalorder %s14, 0
      %p34 = por %p32, %p33
      %p35 = scmp.ne.s32.totalorder %s24, %s27
      %p36 = scmp.eq.s32.totalorder %s19, 1
      %p37 = por %p35, %p36
      %p38 = scmp.ne.s32.totalorder %s27, %s28
      %p39 = scmp.eq.s32.totalorder %s19, 0
      %p40 = por %p38, %p39
      %p41 = scmp.ne.s32.totalorder %s27, %s28
      %p42 = scmp.eq.s32.totalorder %s20, 1
      %p43 = por %p41, %p42
      %p45 = scmp.ne.s32.totalorder %s28, %s44
      %p46 = scmp.eq.s32.totalorder %s20, 0
      %p47 = por %p45, %p46
      %s49 = sadd.s32 %s48, 1
      %p52 = scmp.eq.s32.totalorder %s14, 1
      %p53 = scmp.ne.s32.totalorder %s48, %s50
      %p54 = scmp.eq.s32.totalorder %s14, 0
      %p55 = por %p53, %p54
      %p56 = scmp.ne.s32.totalorder %s48, %s50
      %p57 = scmp.eq.s32.totalorder %s19, 1
      %p58 = por %p56, %p57
      %p59 = scmp.ne.s32.totalorder %s50, %s51
      %p60 = scmp.eq.s32.totalorder %s19, 0
      %p61 = por %p59, %p60
      %p62 = scmp.ne.s32.totalorder %s50, %s51
      %p63 = scmp.eq.s32.totalorder %s20, 1
      %p64 = por %p62, %p63
      %p66 = scmp.ne.s32.totalorder %s51, %s65
      %p67 = scmp.eq.s32.totalorder %s20, 0
      %p68 = por %p66, %p67
      %s70 = sadd.s32 %s69, 1
      %p73 = scmp.eq.s32.totalorder %s14, 1
      %p74 = scmp.ne.s32.totalorder %s69, %s71
      %p75 = scmp.eq.s32.totalorder %s14, 0
      %p76 = por %p74, %p75
      %p77 = scmp.ne.s32.totalorder %s69, %s71
      %p78 = scmp.eq.s32.totalorder %s19, 1
      %p79 = por %p77, %p78
      %p80 = scmp.ne.s32.totalorder %s71, %s72
      %p81 = scmp.eq.s32.totalorder %s19, 0
      %p82 = por %p80, %p81
      %p83 = scmp.ne.s32.totalorder %s71, %s72
      %p84 = scmp.eq.s32.totalorder %s20, 1
      %p85 = por %p83, %p84
      %p87 = scmp.ne.s32.totalorder %s72, %s86
      %p88 = scmp.eq.s32.totalorder %s20, 0
      %p89 = por %p87, %p88
      %s90 = ssub.s32 %s14, %s21
      %p91 = scmp.eq.s32.totalorder %s90, 0
      %s93 = sadd.s32 %s92, 1
      %s94 = scalar_select %p91, %s92, %s93
      %p97 = pneg %p91
      %p98 = scmp.eq.s32.totalorder %s14, 1
      %p99 = por %p97, %p98
      %p100 = scmp.ne.s32.totalorder %s92, %s95
      %p101 = scmp.eq.s32.totalorder %s14, 0
      %p102 = por %p100, %p101
      %p103 = scmp.ne.s32.totalorder %s92, %s95
      %p104 = scmp.eq.s32.totalorder %s19, 1
      %p105 = por %p103, %p104
      %p106 = scmp.ne.s32.totalorder %s95, %s96
      %p107 = scmp.eq.s32.totalorder %s19, 0
      %p108 = por %p106, %p107
      %p109 = scmp.ne.s32.totalorder %s95, %s96
      %p110 = scmp.eq.s32.totalorder %s20, 1
      %p111 = por %p109, %p110
      %p113 = scmp.ne.s32.totalorder %s96, %s112
      %p114 = scmp.eq.s32.totalorder %s20, 0
      %p115 = por %p113, %p114
      %s116 = ssub.s32 %s14, %s21
      %p117 = scmp.eq.s32.totalorder %s116, 0
      %s119 = sadd.s32 %s118, 1
      %s120 = scalar_select %p117, %s118, %s119
      %p123 = pneg %p117
      %p124 = scmp.eq.s32.totalorder %s14, 1
      %p125 = por %p123, %p124
      %p126 = scmp.ne.s32.totalorder %s118, %s121
      %p127 = scmp.eq.s32.totalorder %s14, 0
      %p128 = por %p126, %p127
      %p129 = scmp.ne.s32.totalorder %s118, %s121
      %p130 = scmp.eq.s32.totalorder %s19, 1
      %p131 = por %p129, %p130
      %p132 = scmp.ne.s32.totalorder %s121, %s122
      %p133 = scmp.eq.s32.totalorder %s19, 0
      %p134 = por %p132, %p133
      %p135 = scmp.ne.s32.totalorder %s121, %s122
      %p136 = scmp.eq.s32.totalorder %s20, 1
      %p137 = por %p135, %p136
      %p139 = scmp.ne.s32.totalorder %s122, %s138
      %p140 = scmp.eq.s32.totalorder %s20, 0
      %p141 = por %p139, %p140
      %p142 = scmp.le.s32.totalorder 1, %s14
      %p143 = scmp.lt.s32.totalorder %s14, 3
      %p144 = pnand %p142, %p143
      %p145 = pneg %p144
      // Predicated region
      $region9: #{tpu_custom_call.1} parent=5 // pred_check
        _
      $region10: #{tpu_custom_call.1} parent=5 // pred_check_branch
        %147 = sbr.rel (%p144) target = $region12
      $region11: #{tpu_custom_call.1} parent=5 // pred_region
        %s148 = ssub.s32 %s14, 1
        // Predicated region
        $region13: #{tpu_custom_call.1} parent=11 // pred_check
          %p149 = pneg %p61
        $region14: #{tpu_custom_call.1} parent=11 // pred_check_branch
          %151 = sbr.rel (%p149) target = $region16
        $region15: #{tpu_custom_call.1} parent=11 // pred_region
          _
        $region16: #{tpu_custom_call.1} parent=11 // pred_fallthru
          _
        // Predicated region
        $region17: #{tpu_custom_call.1} parent=11 // pred_check
          %p152 = pneg %p82
        $region18: #{tpu_custom_call.1} parent=11 // pred_check_branch
          %154 = sbr.rel (%p152) target = $region20
        $region19: #{tpu_custom_call.1} parent=11 // pred_region
          _
        $region20: #{tpu_custom_call.1} parent=11 // pred_fallthru
          _
      $region12: #{tpu_custom_call.1} parent=5 // pred_fallthru
        _
      %p155 = scmp.lt.s32.totalorder %s14, 2
      // Predicated region
      $region21: #{tpu_custom_call.1} parent=5 // pred_check
        %p156 = pneg %p155
      $region22: #{tpu_custom_call.1} parent=5 // pred_check_branch
        %158 = sbr.rel (%p156) target = $region24
      $region23: #{tpu_custom_call.1} parent=5 // pred_region
        // Predicated region
        $region25: #{tpu_custom_call.1} parent=23 // pred_check
          %p159 = pneg %p34
        $region26: #{tpu_custom_call.1} parent=23 // pred_check_branch
          %161 = sbr.rel (%p159) target = $region28
        $region27: #{tpu_custom_call.1} parent=23 // pred_region
          %p162 = scmp.lt.s32.totalorder %s14, 1
          %s163 = scalar_select %p162, %s14, 1
          %s164 = smul.addr %s163, 8
          %s165 = scalar_lea.vmem %s0, %s164
        $region28: #{tpu_custom_call.1} parent=23 // pred_fallthru
          _
      $region24: #{tpu_custom_call.1} parent=5 // pred_fallthru
        _
      %p166 = scmp.le.s32.totalorder 1, %s14
      %p167 = scmp.lt.s32.totalorder %s14, 3
      %p168 = pnand %p166, %p167
      %p169 = pneg %p168
      // Predicated region
      $region29: #{tpu_custom_call.1} parent=5 // pred_check
        _
      $region30: #{tpu_custom_call.1} parent=5 // pred_check_branch
        %171 = sbr.rel (%p168) target = $region32
      $region31: #{tpu_custom_call.1} parent=5 // pred_region
        %s172 = ssub.s32 %s14, 1
        %p173 = scmp.lt.s32.totalorder %s19, 1
        %s174 = scalar_select %p173, %s19, 1
        %s175 = smul.addr %s174, 8
        %s176 = scalar_lea.vmem %s0, %s175
        %p177 = pneg %p40
        %p178 = pneg %p37
        %p179 = pneg %p61
        %p180 = pneg %p58
        %p181 = pneg %p82
        %p182 = pneg %p79
        %p183 = pneg %p108
        %p184 = pneg %p105
        %p185 = scmp.lt.s32.totalorder %s19, 1
        %s186 = scalar_select %p185, %s19, 1
        %s187 = smul.addr %s186, 8
        %s188 = scalar_lea.vmem %s3, %s187
        %p189 = pneg %p134
        %p190 = pneg %p131
        %s191 = sand.u32 %s121, 1
        %s192 = scalar_lea.sflag [#allocation3], %s191
        %s193 = sand.u32 %s121, 1
        %s194 = smul.addr %s193, 2
        %s195 = scalar_lea.vmem [#allocation2], %s194
        %p196 = scmp.lt.s32.totalorder %s19, 1
        %s197 = scalar_select %p196, %s19, 1
        %s198 = smul.addr %s197, 8
        %s199 = scalar_lea.vmem %s0, %s198
        %p200 = scmp.lt.s32.totalorder %s19, 1
        %s201 = scalar_select %p200, %s19, 1
        %s202 = smul.addr %s201, 8
        %s203 = scalar_lea.vmem %s3, %s202
        %v204 = vld [vmem:[%s199] sm:$0xff]
        %vm205 = vcmask 31744
        %v206 = vsel %vm205, %v204, 0.0
        %v207 = vrot.slane %v206, 4
        %v208 = vadd.f32 %v206, %v207
        %v209 = vrot.slane %v208, 2
        %v210 = vadd.f32 %v208, %v209
        %v211 = vrot.slane %v210, 1
        %v212 = vadd.f32 %v210, %v211
        %v213 = vmul.f32 %v212, 0.125
        %v214 = vsub.f32 %v204, %v213
        %v215 = vmul.f32 %v214, %v214
        %v216 = vsel %vm205, %v215, 0.0
        %v217 = vrot.slane %v216, 4
        %v218 = vadd.f32 %v216, %v217
        %v219 = vrot.slane %v218, 2
        %v220 = vadd.f32 %v218, %v219
        %v221 = vrot.slane %v220, 1
        %v222 = vadd.f32 %v220, %v221
        %v223 = vmul.f32 %v222, 0.125
        %v224 = vadd.f32 %v223, 1e-05
        %v225 = vrsqrt.pop %v224
        %v226 = vmul.f32 %v225, %v224
        %v227 = vmul.f32 %v226, %v225
        %v228 = vmul.f32 0.5, %v227
        %v229 = vsub.f32 1.5, %v228
        %v230 = vmul.f32 %v225, %v229
        %v231 = vmul.f32 %v224, %v230
        %vm232 = vcmp.eq.f32.partialorder %v224, inf
        %v233 = vsel %vm232, %v224, %v231
        %vm234 = vcmp.eq.f32.partialorder %v224, 0.0
        %v235 = vand.u32 %v224, 2147483648
        %v236 = vsel %vm234, %v235, %v233
        %v237 = vld [vmem:[%s1] sm:$0x1]
        %v238 = vld [vmem:[%s2] sm:$0x1]
        %v239 = vrcp.pop %v236
        %v240 = vmul.f32 %v236, %v239
        %v241 = vsub.f32 1.0, %v240
        %v242 = vmul.f32 %v239, %v241
        %v243 = vadd.f32 %v239, %v242
        %vm244 = vweird.f32 %v236
        %vm245 = vweird.f32 %v239
        %vm246 = vmor %vm244, %vm245
        %v247 = vsel %vm246, %v239, %v243
        %v248 = vand.u32 2147483647, %v236
        %vm249 = vcmp.eq.f32.partialorder %v248, 8.507059e+37
        %v250 = vand.u32 %v236, 2147483648
        %v251 = vor.u32 1.1754944e-38, %v250
        %v252 = vsel %vm249, %v251, %v247
        %v253 = vmul.f32 %v237, %v252
        %v255 = vperm.slane %v253, 0
        %v257 = vmul.f32 %v214, %v255
        %v259 = vperm.slane %v238, 0
        %v261 = vadd.f32 %v257, %v259
        %262 = vst.msk [vmem:[%s203] sm:$0xff] %vm205, %v261
        %v263 = vlaneseq
        %v264 = vshrl.u32 %v263, 7
        %vm265 = vcmp.eq.s32.totalorder %v264, 0
        %v266 = vsel %vm265, %v213, %v236
        %vm267 = vcmask 25600
        %268 = vst.msk [vmem:[%s195] sm:$0x3] %vm267, %v266
        %p269 = scmp.lt.s32.totalorder %s19, 1
        %s270 = scalar_select %p269, %s19, 1
        %s271 = smul.addr %s270, 8
        %s272 = scalar_lea.vmem %s3, %s271
        %s273 = sand.u32 %s121, 1
        %s274 = scalar_lea.sflag [#allocation3], %s273
        %s275 = sand.u32 %s121, 1
        %s276 = smul.addr %s275, 2
        %s277 = scalar_lea.vmem [#allocation2], %s276
        // Predicated region
        $region33: #{tpu_custom_call.1} parent=31 // pred_check
          %p278 = pneg %p105
        $region34: #{tpu_custom_call.1} parent=31 // pred_check_branch
          %280 = sbr.rel (%p278) target = $region36
        $region35: #{tpu_custom_call.1} parent=31 // pred_region
          _
        $region36: #{tpu_custom_call.1} parent=31 // pred_fallthru
          _
        // Predicated region
        $region37: #{tpu_custom_call.1} parent=31 // pred_check
          %p281 = pneg %p131
        $region38: #{tpu_custom_call.1} parent=31 // pred_check_branch
          %283 = sbr.rel (%p281) target = $region40
        $region39: #{tpu_custom_call.1} parent=31 // pred_region
          %285 = vsyncadd %s274, 0
          %s286 = smul.addr %s19, 2
          %s287 = scalar_lea.hbm %s4, %s286
          %s289 = sshll.u32 %s277, 4
          %s290 = int_to_ptr.vmem [resolvable:$true] %s289
          %s291 = sshll.u32 %s287, 4
          %s292 = int_to_ptr.hbm [resolvable:$true] %s291
          %294 = dma.vmem_to_hbm [thread:$0]  %s290, 32, %s292, %s274
        $region40: #{tpu_custom_call.1} parent=31 // pred_fallthru
          _
      $region32: #{tpu_custom_call.1} parent=5 // pred_fallthru
        _
      %p295 = scmp.le.s32.totalorder 2, %s14
      // Predicated region
      $region41: #{tpu_custom_call.1} parent=5 // pred_check
        %p296 = pneg %p295
      $region42: #{tpu_custom_call.1} parent=5 // pred_check_branch
        %298 = sbr.rel (%p296) target = $region44
      $region43: #{tpu_custom_call.1} parent=5 // pred_region
        %s299 = ssub.s32 %s14, 2
        // Predicated region
        $region45: #{tpu_custom_call.1} parent=43 // pred_check
          %p300 = pneg %p111
        $region46: #{tpu_custom_call.1} parent=43 // pred_check_branch
          %302 = sbr.rel (%p300) target = $region48
        $region47: #{tpu_custom_call.1} parent=43 // pred_region
          %p303 = scmp.lt.s32.totalorder %s20, 1
          %s304 = scalar_select %p303, %s20, 1
          %s305 = smul.addr %s304, 8
          %s306 = scalar_lea.vmem %s3, %s305
        $region48: #{tpu_custom_call.1} parent=43 // pred_fallthru
          _
        // Predicated region
        $region49: #{tpu_custom_call.1} parent=43 // pred_check
          %p307 = pneg %p137
        $region50: #{tpu_custom_call.1} parent=43 // pred_check_branch
          %309 = sbr.rel (%p307) target = $region52
        $region51: #{tpu_custom_call.1} parent=43 // pred_region
          %s310 = sand.u32 %s122, 1
          %s311 = scalar_lea.sflag [#allocation3], %s310
          %s312 = sand.u32 %s122, 1
          %s313 = smul.addr %s312, 2
          %s314 = scalar_lea.vmem [#allocation2], %s313
          %316 = dma.done %s311, 32
        $region52: #{tpu_custom_call.1} parent=43 // pred_fallthru
          _
      $region44: #{tpu_custom_call.1} parent=5 // pred_fallthru
        _
    $region6: #{tpu_custom_call.1} parent=1 // loop_footer
      %s18 = sadd.s32 1, %s14
    $region7: #{tpu_custom_call.1} parent=1 // loop_footer_branch
      %13 = sbr.rel target = $region3
    $region8: #{tpu_custom_call.1} parent=1 // loop_exit
      _
    %317 = vsyncpa [#allocation3], 1
    %s318 = scalar_lea.sflag [#allocation3], 1
    %319 = vsyncpa %s318, 1

</llo_original>
